<compile_context>
chip_gen: v7x
topology: tpu7x:2x2x1
jax: 0.10.0
libtpu: 0.0.40
codegen_flags: <defaults>
</compile_context>

<pallas_src>
import jax
import jax.numpy as jnp
from jax.experimental import pallas as pl
from jax.experimental.pallas import tpu as pltpu

EPS = 1e-6
LANE = 128


def _make_kernel(n_scalars, n_vec):
    """Kernel over a (1, C, TR, 128) tile: channels live on a leading dim."""

    def kernel(x_ref, o_ref):
        out_dtype = o_ref.dtype

        # --- scalar channels: ReLU in the native dtype --------------------
        if n_scalars > 0:
            s = x_ref[:, :n_scalars, :, :]
            o_ref[:, :n_scalars, :, :] = jnp.maximum(s, 0.0).astype(out_dtype)

        # --- vector channel pairs: gate = max(1 - rsqrt(|v|^2 + EPS), 0) --
        # Pairing is static indexing on a leading (non-tiled) dim: no sublane
        # shuffles, full (TR, 128) unmasked loads/stores per channel.
        # TODO(synk): for very large n_vec, switch to two strided
        # pl.ds(..., stride=2) slabs instead of this unrolled loop.
        for k in range(n_vec):
            c0 = n_scalars + 2 * k
            c1 = c0 + 1
            a = x_ref[:, c0, :, :]
            b = x_ref[:, c1, :, :]
            af = a.astype(jnp.float32)
            bf = b.astype(jnp.float32)
            inv_l = jax.lax.rsqrt(af * af + bf * bf + EPS)   # EPS inside: no NaN
            gate = jnp.maximum(1.0 - inv_l, 0.0)             # == relu(l-1)/l
            g = gate.astype(out_dtype)                       # multiply in native dtype
            o_ref[:, c0, :, :] = (a * g).astype(out_dtype)
            o_ref[:, c1, :, :] = (b * g).astype(out_dtype)

    return kernel


def _jnp_forward(xf, n_scalars):
    """Pure-jnp forward on a (B, C, ...) array (used only for <128-wide tails)."""
    s = jnp.maximum(xf[:, :n_scalars], 0.0)
    v = xf[:, n_scalars:]
    x2 = v * v
    l2 = (x2[:, 0::2] + x2[:, 1::2]).astype(jnp.float32) + EPS
    gate = jnp.maximum(1.0 - jax.lax.rsqrt(l2), 0.0)
    gate = jnp.repeat(gate, 2, axis=1).astype(xf.dtype)
    return jnp.concatenate([s, v * gate], axis=1).astype(xf.dtype)


def scalar_vector_sigmoid(x, n_scalars, *, row_tile=None):
    """x: (B, C, H, W); first n_scalars channels scalar, rest vector pairs."""
    B, C, H, W = x.shape
    n_vec2 = C - n_scalars
    assert n_vec2 >= 0 and n_vec2 % 2 == 0, "vector channels must come in pairs"
    n_vec = n_vec2 // 2
    M = H * W

    xf = x.reshape(B, C, M)                      # free view (contiguous)
    M_main = (M // LANE) * LANE
    if M_main == 0:
        # Spatial extent smaller than one lane group: pure jnp is cheapest.
        return _jnp_forward(xf, n_scalars).reshape(B, C, H, W)

    x_main = xf if M_main == M else xf[:, :, :M_main]
    R = M_main // LANE
    xr = x_main.reshape(B, C, R, LANE)           # free view

    itemsize = jnp.dtype(x.dtype).itemsize
    # Sublane rounding: 8 rows per vreg for 32-bit, 16 for 16-bit, 32 for 8-bit.
    sub_mult = 8 * max(1, 4 // itemsize)

    if row_tile is None:
        # ~4 MiB per input block; total VMEM ~ 4x block (in+out, double-buffered).
        bytes_per_row = C * LANE * itemsize
        row_tile = max(sub_mult, ((4 << 20) // max(1, bytes_per_row)))
    row_tile = max(sub_mult, (row_tile // sub_mult) * sub_mult)
    row_tile = min(row_tile, R)

    # Keep at least ~4 grid steps so both v7x TensorCores get work and the
    # pipeline has something to overlap (only when shrinking stays legal).
    if row_tile > sub_mult:
        while B * pl.cdiv(R, row_tile) < 4 and row_tile > sub_mult:
            new_rt = max(sub_mult, ((row_tile // 2) // sub_mult) * sub_mult)
            if new_rt == row_tile:
                break
            row_tile = new_rt

    block_bytes = C * row_tile * LANE * itemsize
    # Explicit scoped-VMEM budget: 2x headroom over (in+out)*double-buffer,
    # floor 32 MiB, cap 48 MiB (safe on v5e 128 / v6e 128 / v7x 64 MiB physical).
    vmem_limit = int(min(max(8 * block_bytes, 32 << 20), 48 << 20))

    grid = (B, pl.cdiv(R, row_tile))
    block = (1, C, row_tile, LANE)

    # TODO(synk): on v7x, verify in a profile that "parallel" actually shards
    # across both TensorCores; otherwise switch an axis to pltpu.CORE_PARALLEL.
    out = pl.pallas_call(
        _make_kernel(n_scalars, n_vec),
        out_shape=jax.ShapeDtypeStruct((B, C, R, LANE), x.dtype),
        grid=grid,
        in_specs=[pl.BlockSpec(block, lambda b, r: (b, 0, r, 0))],
        out_specs=pl.BlockSpec(block, lambda b, r: (b, 0, r, 0)),
        compiler_params=pltpu.CompilerParams(
            dimension_semantics=("parallel", "parallel"),
            vmem_limit_bytes=vmem_limit,
        ),
    )(xr)

    out_main = out.reshape(B, C, M_main)
    if M_main == M:
        return out_main.reshape(B, C, H, W)

    # Ragged tail (< 128 spatial elements): tiny pure-jnp epilogue, no
    # whole-tensor pad/slice passes.
    out_tail = _jnp_forward(xf[:, :, M_main:], n_scalars)
    return jnp.concatenate([out_main, out_tail], axis=-1).reshape(B, C, H, W)


def _reference(x, n_scalars):
    """Pure-JAX mirror of the PyTorch ScalarVectorSigmoid forward."""
    s = jnp.maximum(x[:, :n_scalars], 0.0)
    v = x[:, n_scalars:]
    x2 = v * v
    l2 = x2[:, 0::2] + x2[:, 1::2] + EPS
    l = jnp.sqrt(l2)
    lr = jnp.repeat(l, 2, axis=1)              # repeat_interleave along channels
    v_out = v * jnp.maximum(lr - 1.0, 0.0) / lr
    return jnp.concatenate([s, v_out], axis=1)


if __name__ == "__main__":
    key = jax.random.PRNGKey(0)
    B, C, H, W = 2, 4, 16, 16
    n_scalars = 2                              # 2 scalar channels + 1 vector pair
    x = jax.random.normal(key, (B, C, H, W), dtype=jnp.float32)

    out = scalar_vector_sigmoid(x, n_scalars)
    out = jax.block_until_ready(out)

    ref = _reference(x, n_scalars)
    assert out.shape == x.shape and out.dtype == x.dtype
    assert jnp.allclose(out, ref, atol=1e-4, rtol=1e-4), "mismatch vs reference"

    print("KERNEL_OK")
</pallas_src>

<mosaic_0001>
module attributes {stable_mosaic.version = 11 : i64} {
  func.func @kernel(%arg0: i32, %arg1: i32, %arg2: memref<1x4x2x128xf32, #tpu.memory_space<vmem>>, %arg3: memref<1x4x2x128xf32, #tpu.memory_space<vmem>>) attributes {dimension_semantics = [#tpu.dimension_semantics<parallel>, #tpu.dimension_semantics<parallel>], iteration_bounds = array<i64: 2, 1>, scalar_prefetch = 0 : i64, scratch_operands = 0 : i64, tpu.core_type = #tpu.core_type<tc>, window_params = [{transform_indices = @transform_0, window_bounds = array<i64: 1, 4, 2, 128>}, {transform_indices = @transform_1, window_bounds = array<i64: 1, 4, 2, 128>}]} {
    %c0 = arith.constant 0 : index
    %c0_0 = arith.constant 0 : index
    %c0_1 = arith.constant 0 : index
    %c0_2 = arith.constant 0 : index
    %0 = vector.load %arg2[%c0, %c0_0, %c0_1, %c0_2] : memref<1x4x2x128xf32, #tpu.memory_space<vmem>>, vector<1x2x2x128xf32>
    %cst = arith.constant 0.000000e+00 : f32
    %1 = vector.broadcast %cst : f32 to vector<1x2x2x128xf32>
    %2 = arith.maximumf %0, %1 : vector<1x2x2x128xf32>
    %c0_3 = arith.constant 0 : index
    %c0_4 = arith.constant 0 : index
    %c0_5 = arith.constant 0 : index
    %c0_6 = arith.constant 0 : index
    %3 = vector.load %arg3[%c0_3, %c0_4, %c0_5, %c0_6] : memref<1x4x2x128xf32, #tpu.memory_space<vmem>>, vector<1x2x2x128xf32>
    tpu.vector_store %arg3[%c0_3, %c0_4, %c0_5, %c0_6], %2 {strides = array<i32>} : memref<1x4x2x128xf32, #tpu.memory_space<vmem>>, vector<1x2x2x128xf32>,
    %c0_7 = arith.constant 0 : index
    %c2 = arith.constant 2 : index
    %c0_8 = arith.constant 0 : index
    %c0_9 = arith.constant 0 : index
    %4 = vector.load %arg2[%c0_7, %c2, %c0_8, %c0_9] : memref<1x4x2x128xf32, #tpu.memory_space<vmem>>, vector<1x1x2x128xf32>
    %5 = vector.shape_cast %4 : vector<1x1x2x128xf32> to vector<1x2x128xf32>
    %c0_10 = arith.constant 0 : index
    %c3 = arith.constant 3 : index
    %c0_11 = arith.constant 0 : index
    %c0_12 = arith.constant 0 : index
    %6 = vector.load %arg2[%c0_10, %c3, %c0_11, %c0_12] : memref<1x4x2x128xf32, #tpu.memory_space<vmem>>, vector<1x1x2x128xf32>
    %7 = vector.shape_cast %6 : vector<1x1x2x128xf32> to vector<1x2x128xf32>
    %8 = arith.mulf %5, %5 : vector<1x2x128xf32>
    %9 = arith.mulf %7, %7 : vector<1x2x128xf32>
    %10 = arith.addf %8, %9 : vector<1x2x128xf32>
    %cst_13 = arith.constant 9.99999997E-7 : f32
    %11 = vector.broadcast %cst_13 : f32 to vector<1x2x128xf32>
    %12 = arith.addf %10, %11 : vector<1x2x128xf32>
    %13 = math.rsqrt %12 : vector<1x2x128xf32>
    %cst_14 = arith.constant 1.000000e+00 : f32
    %14 = vector.broadcast %cst_14 : f32 to vector<1x2x128xf32>
    %15 = arith.subf %14, %13 : vector<1x2x128xf32>
    %cst_15 = arith.constant 0.000000e+00 : f32
    %16 = vector.broadcast %cst_15 : f32 to vector<1x2x128xf32>
    %17 = arith.maximumf %15, %16 : vector<1x2x128xf32>
    %18 = arith.mulf %5, %17 : vector<1x2x128xf32>
    %c0_16 = arith.constant 0 : index
    %c2_17 = arith.constant 2 : index
    %c0_18 = arith.constant 0 : index
    %c0_19 = arith.constant 0 : index
    %19 = vector.load %arg3[%c0_16, %c2_17, %c0_18, %c0_19] : memref<1x4x2x128xf32, #tpu.memory_space<vmem>>, vector<1x1x2x128xf32>
    %20 = vector.shape_cast %19 : vector<1x1x2x128xf32> to vector<1x2x128xf32>
    %21 = vector.shape_cast %18 : vector<1x2x128xf32> to vector<1x1x2x128xf32>
    tpu.vector_store %arg3[%c0_16, %c2_17, %c0_18, %c0_19], %21 {strides = array<i32>} : memref<1x4x2x128xf32, #tpu.memory_space<vmem>>, vector<1x1x2x128xf32>,
    %22 = arith.mulf %7, %17 : vector<1x2x128xf32>
    %c0_20 = arith.constant 0 : index
    %c3_21 = arith.constant 3 : index
    %c0_22 = arith.constant 0 : index
    %c0_23 = arith.constant 0 : index
    %23 = vector.load %arg3[%c0_20, %c3_21, %c0_22, %c0_23] : memref<1x4x2x128xf32, #tpu.memory_space<vmem>>, vector<1x1x2x128xf32>
    %24 = vector.shape_cast %23 : vector<1x1x2x128xf32> to vector<1x2x128xf32>
    %25 = vector.shape_cast %22 : vector<1x2x128xf32> to vector<1x1x2x128xf32>
    tpu.vector_store %arg3[%c0_20, %c3_21, %c0_22, %c0_23], %25 {strides = array<i32>} : memref<1x4x2x128xf32, #tpu.memory_space<vmem>>, vector<1x1x2x128xf32>,
    return
  }
  func.func @transform_0(%arg0: i32, %arg1: i32) -> (i32, i32, i32, i32) {
    %c0_i32 = arith.constant 0 : i32
    %c0_i32_0 = arith.constant 0 : i32
    %c0_i32_1 = arith.constant 0 : i32
    return %arg0, %c0_i32, %arg1, %c0_i32_0 : i32, i32, i32, i32
  }
  func.func @transform_1(%arg0: i32, %arg1: i32) -> (i32, i32, i32, i32) {
    %c0_i32 = arith.constant 0 : i32
    %c0_i32_0 = arith.constant 0 : i32
    %c0_i32_1 = arith.constant 0 : i32
    return %arg0, %c0_i32, %arg1, %c0_i32_0 : i32, i32, i32, i32
  }
}

</mosaic_0001>

<llo_original>
// kernel: tpu_custom_call.1
$region0: #{tpu_custom_call.1}
  #allocation0 [shape = 'u32[]', space=smem, size = 0x4, offset = 0x4, fixed_abs, tag = 'smem constant byte address 0x4 - core index']
  #allocation1 [shape = 'u32[144,128]{1,0:T(1,128)}', space=vmem, size = 0x12000, scoped, tag = 'internal scratch']
  %s0 = inlined_call_operand.hbm [shape: f32[2,4,2,128], index: 0, kind: input, shape index: {}]
  %s1 = inlined_call_operand.hbm [shape: f32[2,4,2,128], index: 1, kind: output, shape index: {}]
  %s2 = sld [smem:[#allocation0]]
  $region41: #{tpu_custom_call.1} parent=0
    _
  %s4 = ssub.s32 1, %s2
  %s5 = scalar_select 0, %s4, %s2
  $region1: #{tpu_custom_call.1} parent=0
    #allocation2 [shape = 'u8[8192]{0}', space=vmem, size = 0x2000, scoped, tag = 'input window, operand 0']
    #allocation3 [shape = 's32[2]{0}', space=sflag, size = 0x8, scoped, tag = 'scoped memory for tpu_custom_call.1']
    #allocation4 [shape = 's32[2]{0}', space=sflag, size = 0x8, scoped, tag = 'scoped memory for tpu_custom_call.1']
    #allocation5 [shape = 'u8[8192]{0}', space=vmem, size = 0x2000, scoped, tag = 'output window, operand 0']
    %6 = vsyncpa [#allocation3], 0
    %s7 = scalar_lea.sflag [#allocation3], 1
    %8 = vsyncpa %s7, 0
    %9 = vsyncpa [#allocation4], 0
    %s10 = scalar_lea.sflag [#allocation4], 1
    %11 = vsyncpa %s10, 0
    loop: start=0, step=1, limit=4
    $region2: #{tpu_custom_call.1} parent=1 // loop_pre_header
      _
    $region3: #{tpu_custom_call.1} parent=1 // loop_header
      %s13 = sphi 0, %s17
      %p14 = scmp.ge.s32.totalorder %s13, 4
      %s20 = sphi 0, %s32
      %s21 = sphi 0, %s28
      %s22 = sphi 0, %s20
      %s23 = sphi 0, %s21
      %s24 = sphi 0, %s22
      %s25 = sphi 0, %s23
      %s37 = sphi 0, %s39
      %s40 = sphi 0, %s37
      %s41 = sphi 0, %s40
      %s57 = sphi 0, %s41
      %s65 = sphi 0, %s67
      %s68 = sphi 0, %s65
      %s69 = sphi 0, %s68
      %s85 = sphi 0, %s69
    $region4: #{tpu_custom_call.1} parent=1 // loop_header_branch
      %16 = sbr.rel (%p14) target = $region8
    $region5: #{tpu_custom_call.1} parent=1 // loop_body
      %s18 = ssub.s32 %s13, 1
      %s19 = ssub.s32 %s13, 2
      %s26 = sadd.s32 1, %s21
      %p27 = scmp.ge.s32.totalorder %s26, 1
      %s28 = scalar_select %p27, 0, %s26
      %s29 = sadd.s32 1, %s20
      %s30 = scalar_select %p27, %s29, %s20
      %p31 = scmp.ge.s32.totalorder %s30, 2
      %s32 = scalar_select %p31, 0, %s30
      %s33 = ssub.s32 %s20, %s32
      %s34 = ssub.s32 %s21, %s28
      %s35 = sor.u32 %s33, %s34
      %p36 = scmp.eq.s32.totalorder %s35, 0
      %s38 = sadd.s32 %s37, 1
      %s39 = scalar_select %p36, %s37, %s38
      %p42 = pneg %p36
      %p43 = scmp.eq.s32.totalorder %s13, 1
      %p44 = por %p42, %p43
      %p45 = scmp.ne.s32.totalorder %s37, %s40
      %p46 = scmp.eq.s32.totalorder %s13, 0
      %p47 = por %p45, %p46
      %p48 = scmp.ne.s32.totalorder %s37, %s40
      %p49 = scmp.eq.s32.totalorder %s18, 1
      %p50 = por %p48, %p49
      %p51 = scmp.ne.s32.totalorder %s40, %s41
      %p52 = scmp.eq.s32.totalorder %s18, 0
      %p53 = por %p51, %p52
      %p54 = scmp.ne.s32.totalorder %s40, %s41
      %p55 = scmp.eq.s32.totalorder %s19, 1
      %p56 = por %p54, %p55
      %p58 = scmp.ne.s32.totalorder %s41, %s57
      %p59 = scmp.eq.s32.totalorder %s19, 0
      %p60 = por %p58, %p59
      %s61 = ssub.s32 %s20, %s32
      %s62 = ssub.s32 %s21, %s28
      %s63 = sor.u32 %s61, %s62
      %p64 = scmp.eq.s32.totalorder %s63, 0
      %s66 = sadd.s32 %s65, 1
      %s67 = scalar_select %p64, %s65, %s66
      %p70 = pneg %p64
      %p71 = scmp.eq.s32.totalorder %s13, 1
      %p72 = por %p70, %p71
      %p73 = scmp.ne.s32.totalorder %s65, %s68
      %p74 = scmp.eq.s32.totalorder %s13, 0
      %p75 = por %p73, %p74
      %p76 = scmp.ne.s32.totalorder %s65, %s68
      %p77 = scmp.eq.s32.totalorder %s18, 1
      %p78 = por %p76, %p77
      %p79 = scmp.ne.s32.totalorder %s68, %s69
      %p80 = scmp.eq.s32.totalorder %s18, 0
      %p81 = por %p79, %p80
      %p82 = scmp.ne.s32.totalorder %s68, %s69
      %p83 = scmp.eq.s32.totalorder %s19, 1
      %p84 = por %p82, %p83
      %p86 = scmp.ne.s32.totalorder %s69, %s85
      %p87 = scmp.eq.s32.totalorder %s19, 0
      %p88 = por %p86, %p87
      %p89 = scmp.le.s32.totalorder 1, %s13
      %p90 = scmp.lt.s32.totalorder %s13, 3
      %p91 = pnand %p89, %p90
      %p92 = pneg %p91
      // Predicated region
      $region9: #{tpu_custom_call.1} parent=5 // pred_check
        _
      $region10: #{tpu_custom_call.1} parent=5 // pred_check_branch
        %94 = sbr.rel (%p91) target = $region12
      $region11: #{tpu_custom_call.1} parent=5 // pred_region
        %s95 = ssub.s32 %s13, 1
      $region12: #{tpu_custom_call.1} parent=5 // pred_fallthru
        _
      %p96 = scmp.lt.s32.totalorder %s13, 2
      // Predicated region
      $region13: #{tpu_custom_call.1} parent=5 // pred_check
        %p97 = pneg %p96
      $region14: #{tpu_custom_call.1} parent=5 // pred_check_branch
        %99 = sbr.rel (%p97) target = $region16
      $region15: #{tpu_custom_call.1} parent=5 // pred_region
        // Predicated region
        $region17: #{tpu_custom_call.1} parent=15 // pred_check
          %p100 = pneg %p47
        $region18: #{tpu_custom_call.1} parent=15 // pred_check_branch
          %102 = sbr.rel (%p100) target = $region20
        $region19: #{tpu_custom_call.1} parent=15 // pred_region
          %s103 = sand.u32 %s37, 1
          %s104 = scalar_lea.sflag [#allocation3], %s103
          %s105 = sand.u32 %s37, 1
          %s106 = smul.addr %s105, 8
          %s107 = scalar_lea.vmem [#allocation2], %s106
          %s109 = ssub.s32 128, 128
          %110 = vsyncadd %s104, %s109
          %s111 = smul.addr %s20, 4
          %s112 = sadd.s32 %s21, %s111
          %s113 = smul.addr %s112, 32
          %s114 = scalar_lea.hbm %s0, %s113
          %s115 = sshll.u32 %s107, 4
          %s116 = int_to_ptr.vmem [resolvable:$true] %s115
          %121 = dma.hbm_to_vmem [thread:$0]  %s114, 128, %s116, %s104, 32, 32, 2
        $region20: #{tpu_custom_call.1} parent=15 // pred_fallthru
          _
      $region16: #{tpu_custom_call.1} parent=5 // pred_fallthru
        _
      %p122 = scmp.le.s32.totalorder 1, %s13
      %p123 = scmp.lt.s32.totalorder %s13, 3
      %p124 = pnand %p122, %p123
      %p125 = pneg %p124
      // Predicated region
      $region21: #{tpu_custom_call.1} parent=5 // pred_check
        _
      $region22: #{tpu_custom_call.1} parent=5 // pred_check_branch
        %127 = sbr.rel (%p124) target = $region24
      $region23: #{tpu_custom_call.1} parent=5 // pred_region
        %s128 = ssub.s32 %s13, 1
        %s129 = sand.u32 %s40, 1
        %s130 = scalar_lea.sflag [#allocation3], %s129
        %s131 = sand.u32 %s40, 1
        %s132 = smul.addr %s131, 8
        %s133 = scalar_lea.vmem [#allocation2], %s132
        // Predicated region
        $region25: #{tpu_custom_call.1} parent=23 // pred_check
          %p134 = pneg %p53
        $region26: #{tpu_custom_call.1} parent=23 // pred_check_branch
          %136 = sbr.rel (%p134) target = $region28
        $region27: #{tpu_custom_call.1} parent=23 // pred_region
          %137 = dma.done %s130, 128
        $region28: #{tpu_custom_call.1} parent=23 // pred_fallthru
          _
        %s138 = sand.u32 %s40, 1
        %s139 = scalar_lea.sflag [#allocation3], %s138
        %s140 = sand.u32 %s40, 1
        %s141 = smul.addr %s140, 8
        %s142 = scalar_lea.vmem [#allocation2], %s141
        %p143 = pneg %p53
        %p144 = pneg %p50
        %p145 = pneg %p81
        %p146 = pneg %p78
        %s147 = sand.u32 %s68, 1
        %s148 = scalar_lea.sflag [#allocation4], %s147
        %s149 = sand.u32 %s68, 1
        %s150 = smul.addr %s149, 8
        %s151 = scalar_lea.vmem [#allocation5], %s150
        %v152 = vld [vmem:[%s133] sm:$0x3]
        %v153 = vld [vmem:[%s133 + $0x2] sm:$0x3]
        %v154 = vmax.f32 %v152, 0.0
        %v155 = vmax.f32 %v153, 0.0
        %156 = vst [vmem:[%s151] sm:$0x3] %v154
        %157 = vst [vmem:[%s151 + $0x2] sm:$0x3] %v155
        %s158 = scalar_lea.vmem %s133, 4 [#allocation2]
        %v159 = vld [vmem:[%s158] sm:$0x3]
        %s160 = scalar_lea.vmem %s133, 6 [#allocation2]
        %v161 = vld [vmem:[%s160] sm:$0x3]
        %v162 = vmul.f32 %v159, %v159
        %v163 = vmul.f32 %v161, %v161
        %v164 = vadd.f32 %v162, %v163
        %v165 = vadd.f32 %v164, 1e-06
        %v166 = vrsqrt.pop %v165
        %v167 = vsub.f32 1.0, %v166
        %v168 = vmax.f32 %v167, 0.0
        %v169 = vmul.f32 %v159, %v168
        %s170 = scalar_lea.vmem %s151, 4 [#allocation5]
        %171 = vst [vmem:[%s170] sm:$0x3] %v169
        %v172 = vmul.f32 %v161, %v168
        %s173 = scalar_lea.vmem %s151, 6 [#allocation5]
        %174 = vst [vmem:[%s173] sm:$0x3] %v172
        %s175 = sand.u32 %s68, 1
        %s176 = scalar_lea.sflag [#allocation4], %s175
        %s177 = sand.u32 %s68, 1
        %s178 = smul.addr %s177, 8
        %s179 = scalar_lea.vmem [#allocation5], %s178
        // Predicated region
        $region29: #{tpu_custom_call.1} parent=23 // pred_check
          %p180 = pneg %p78
        $region30: #{tpu_custom_call.1} parent=23 // pred_check_branch
          %182 = sbr.rel (%p180) target = $region32
        $region31: #{tpu_custom_call.1} parent=23 // pred_region
          %s184 = ssub.s32 128, 128
          %185 = vsyncadd %s176, %s184
          %s186 = smul.addr %s22, 4
          %s187 = sadd.s32 %s23, %s186
          %s188 = smul.addr %s187, 32
          %s189 = scalar_lea.hbm %s1, %s188
          %s190 = sshll.u32 %s179, 4
          %s191 = int_to_ptr.vmem [resolvable:$true] %s190
          %196 = dma.vmem_to_hbm [thread:$0]  %s191, 128, %s189, %s176, 32, 32, 2
        $region32: #{tpu_custom_call.1} parent=23 // pred_fallthru
          _
      $region24: #{tpu_custom_call.1} parent=5 // pred_fallthru
        _
      %p197 = scmp.le.s32.totalorder 2, %s13
      // Predicated region
      $region33: #{tpu_custom_call.1} parent=5 // pred_check
        %p198 = pneg %p197
      $region34: #{tpu_custom_call.1} parent=5 // pred_check_branch
        %200 = sbr.rel (%p198) target = $region36
      $region35: #{tpu_custom_call.1} parent=5 // pred_region
        %s201 = ssub.s32 %s13, 2
        // Predicated region
        $region37: #{tpu_custom_call.1} parent=35 // pred_check
          %p202 = pneg %p84
        $region38: #{tpu_custom_call.1} parent=35 // pred_check_branch
          %204 = sbr.rel (%p202) target = $region40
        $region39: #{tpu_custom_call.1} parent=35 // pred_region
          %s205 = sand.u32 %s69, 1
          %s206 = scalar_lea.sflag [#allocation4], %s205
          %s207 = sand.u32 %s69, 1
          %s208 = smul.addr %s207, 8
          %s209 = scalar_lea.vmem [#allocation5], %s208
          %210 = dma.done %s206, 128
        $region40: #{tpu_custom_call.1} parent=35 // pred_fallthru
          _
      $region36: #{tpu_custom_call.1} parent=5 // pred_fallthru
        _
    $region6: #{tpu_custom_call.1} parent=1 // loop_footer
      %s17 = sadd.s32 1, %s13
    $region7: #{tpu_custom_call.1} parent=1 // loop_footer_branch
      %12 = sbr.rel target = $region3
    $region8: #{tpu_custom_call.1} parent=1 // loop_exit
      _
    %211 = vsyncpa [#allocation3], 1
    %s212 = scalar_lea.sflag [#allocation3], 1
    %213 = vsyncpa %s212, 1
    %214 = vsyncpa [#allocation4], 1
    %s215 = scalar_lea.sflag [#allocation4], 1
    %216 = vsyncpa %s215, 1

</llo_original>
